<compile_context>
chip_gen: v5e
topology: v5e:2x2
jax: 0.10.0
libtpu: 0.0.40
codegen_flags: <defaults>
</compile_context>

<pallas_src>
import functools
import math

import jax
import jax.numpy as jnp
from jax.experimental import pallas as pl
from jax.experimental.pallas import tpu as pltpu


def _round_up(x: int, n: int) -> int:
    return ((x + n - 1) // n) * n


def _gelu_proj_kernel(x_ref, w_ref, b_ref, o_ref, acc_ref, *, approximate: str):
    k = pl.program_id(2)

    @pl.when(k == 0)
    def _():
        acc_ref[...] = jnp.zeros_like(acc_ref)

    # Native-dtype tiles straight into the MXU; f32 accumulation.
    acc_ref[...] += jnp.dot(
        x_ref[...], w_ref[...], preferred_element_type=jnp.float32
    )

    @pl.when(k == pl.num_programs(2) - 1)
    def _():
        y = acc_ref[...] + b_ref[...].astype(jnp.float32)
        if approximate == "tanh":
            # 0.5*x*(1 + tanh(sqrt(2/pi)*(x + 0.044715*x^3)))  (EUP tanh)
            c = jnp.float32(0.7978845608028654)
            y = 0.5 * y * (1.0 + jnp.tanh(c * (y + 0.044715 * (y * y * y))))
        else:
            # exact GELU: 0.5*x*(1 + erf(x/sqrt(2)))
            inv_sqrt2 = jnp.float32(0.7071067811865476)
            y = 0.5 * y * (1.0 + jax.lax.erf(y * inv_sqrt2))
        o_ref[...] = y.astype(o_ref.dtype)


def gelu_proj(hidden_states, weight, bias, approximate: str = "none",
              *, tm: int = 256, tn: int = 256, tk: int = 512):
    """Pallas equivalent of the GELU module forward.

    hidden_states: [..., dim_in]
    weight:        [dim_in, dim_out]  (already transposed vs torch's [out, in])
    bias:          [dim_out]
    """
    *lead, dim_in = hidden_states.shape
    dim_out = weight.shape[1]
    m = math.prod(lead) if lead else 1

    out_dtype = hidden_states.dtype

    # Sublane granularity depends on input itemsize (8 for f32, 16 for bf16, ...).
    sub = {4: 8, 2: 16, 1: 32}.get(jnp.dtype(hidden_states.dtype).itemsize, 8)

    # Clamp tiles to (padded) problem size; keep N lane-dense (multiple of 128).
    tm = min(tm, _round_up(m, sub))
    tn = min(tn, _round_up(dim_out, 128))
    tk = min(tk, _round_up(dim_in, 128))

    m_p = _round_up(m, tm)
    n_p = _round_up(dim_out, tn)
    k_p = _round_up(dim_in, tk)

    x2d = hidden_states.reshape(m, dim_in)
    b2d = bias.reshape(1, dim_out)

    # Zero-pad to tile multiples (zeros on K contribute nothing to the matmul;
    # padded M rows / N cols are sliced off below).
    if (m_p, k_p) != (m, dim_in):
        x2d = jnp.pad(x2d, ((0, m_p - m), (0, k_p - dim_in)))
    w_pad = weight
    if (k_p, n_p) != (dim_in, dim_out):
        w_pad = jnp.pad(weight, ((0, k_p - dim_in), (0, n_p - dim_out)))
    if n_p != dim_out:
        b2d = jnp.pad(b2d, ((0, 0), (0, n_p - dim_out)))

    grid = (n_p // tn, m_p // tm, k_p // tk)  # (j, i, k): reduction last

    itemsize = jnp.dtype(hidden_states.dtype).itemsize
    w_itemsize = jnp.dtype(weight.dtype).itemsize
    cost = pl.CostEstimate(
        flops=2 * m * dim_in * dim_out,
        transcendentals=m * dim_out,
        bytes_accessed=(m * dim_in * itemsize
                        + dim_in * dim_out * w_itemsize
                        + dim_out * w_itemsize
                        + m * dim_out * itemsize),
    )

    out = pl.pallas_call(
        functools.partial(_gelu_proj_kernel, approximate=approximate),
        out_shape=jax.ShapeDtypeStruct((m_p, n_p), out_dtype),
        grid_spec=pltpu.PrefetchScalarGridSpec(
            num_scalar_prefetch=0,
            grid=grid,
            in_specs=[
                pl.BlockSpec((tm, tk), lambda j, i, k: (i, k)),   # x tile
                pl.BlockSpec((tk, tn), lambda j, i, k: (k, j)),   # W tile
                pl.BlockSpec((1, tn), lambda j, i, k: (0, j)),    # bias tile
            ],
            out_specs=pl.BlockSpec((tm, tn), lambda j, i, k: (i, j)),
            scratch_shapes=[pltpu.VMEM((tm, tn), jnp.float32)],
        ),
        compiler_params=pltpu.CompilerParams(
            dimension_semantics=("parallel", "parallel", "arbitrary"),
        ),
        cost_estimate=cost,
    )(x2d, w_pad, b2d)

    out = out[:m, :dim_out]
    return out.reshape(*lead, dim_out)


def init_gelu_params(key, dim_in, dim_out, dtype=jnp.float32):
    # Mimic torch.nn.Linear default init: U(-1/sqrt(dim_in), 1/sqrt(dim_in))
    kw, kb = jax.random.split(key)
    bound = 1.0 / (dim_in ** 0.5)
    weight = jax.random.uniform(kw, (dim_in, dim_out), dtype, -bound, bound)
    bias = jax.random.uniform(kb, (dim_out,), dtype, -bound, bound)
    return weight, bias


if __name__ == "__main__":
    key = jax.random.PRNGKey(0)
    k_x, k_p = jax.random.split(key)

    batch, seq, dim_in, dim_out = 2, 8, 32, 64
    x = jax.random.normal(k_x, (batch, seq, dim_in), dtype=jnp.float32)
    weight, bias = init_gelu_params(k_p, dim_in, dim_out)

    # approximate='none' is the module default (exact erf GELU)
    out = gelu_proj(x, weight, bias, approximate="none")
    jax.block_until_ready(out)

    ref = jax.nn.gelu(x @ weight + bias, approximate=False)
    assert out.shape == (batch, seq, dim_out)
    assert jnp.allclose(out, ref, atol=1e-5, rtol=1e-5)

    # tanh-approximation path
    out_t = gelu_proj(x, weight, bias, approximate="tanh")
    jax.block_until_ready(out_t)
    ref_t = jax.nn.gelu(x @ weight + bias, approximate=True)
    assert jnp.allclose(out_t, ref_t, atol=1e-5, rtol=1e-5)

    print("KERNEL_OK")
</pallas_src>

<mosaic_0001>
module attributes {stable_mosaic.version = 11 : i64} {
  func.func @_gelu_proj_kernel(%arg0: i32, %arg1: i32, %arg2: i32, %arg3: memref<16x128xf32, #tpu.memory_space<vmem>>, %arg4: memref<128x128xf32, #tpu.memory_space<vmem>>, %arg5: memref<1x128xf32, #tpu.memory_space<vmem>>, %arg6: memref<16x128xf32, #tpu.memory_space<vmem>>, %arg7: memref<16x128xf32, #tpu.memory_space<vmem>>) attributes {dimension_semantics = [#tpu.dimension_semantics<parallel>, #tpu.dimension_semantics<parallel>, #tpu.dimension_semantics<arbitrary>], iteration_bounds = array<i64: 1, 1, 1>, scalar_prefetch = 0 : i64, scratch_operands = 1 : i64, tpu.core_type = #tpu.core_type<tc>, window_params = [{transform_indices = @transform_0, window_bounds = array<i64: 16, 128>}, {transform_indices = @transform_1, window_bounds = array<i64: 128, 128>}, {transform_indices = @transform_2, window_bounds = array<i64: 1, 128>}, {transform_indices = @transform_3, window_bounds = array<i64: 16, 128>}]} {
    %c0_i32 = arith.constant 0 : i32
    %0 = arith.cmpi eq, %arg2, %c0_i32 : i32
    %1 = arith.extui %0 : i1 to i32
    %c0_i32_0 = arith.constant 0 : i32
    %2 = arith.cmpi ne, %1, %c0_i32_0 : i32
    scf.if %2 {
      %cst_10 = arith.constant 0.000000e+00 : f32
      %12 = vector.broadcast %cst_10 : f32 to vector<16x128xf32>
      %c0_11 = arith.constant 0 : index
      %c0_12 = arith.constant 0 : index
      %13 = vector.load %arg7[%c0_11, %c0_12] : memref<16x128xf32, #tpu.memory_space<vmem>>, vector<16x128xf32>
      tpu.vector_store %arg7[%c0_11, %c0_12], %12 {strides = array<i32>} : memref<16x128xf32, #tpu.memory_space<vmem>>, vector<16x128xf32>,
    } else {
    }
    %c0 = arith.constant 0 : index
    %c0_1 = arith.constant 0 : index
    %3 = vector.load %arg7[%c0, %c0_1] : memref<16x128xf32, #tpu.memory_space<vmem>>, vector<16x128xf32>
    %c0_2 = arith.constant 0 : index
    %c0_3 = arith.constant 0 : index
    %4 = vector.load %arg3[%c0_2, %c0_3] : memref<16x128xf32, #tpu.memory_space<vmem>>, vector<16x128xf32>
    %c0_4 = arith.constant 0 : index
    %c0_5 = arith.constant 0 : index
    %5 = vector.load %arg4[%c0_4, %c0_5] : memref<128x128xf32, #tpu.memory_space<vmem>>, vector<128x128xf32>
    %cst = arith.constant dense<0.000000e+00> : vector<16x128xf32>
    %6 = tpu.matmul %4, %5, %cst {dimension_numbers = #tpu.dot_dimension_numbers<[1], [0], [0], [1], [0, 0, 1, 1], [], []>} : vector<16x128xf32>, vector<128x128xf32>, vector<16x128xf32> -> vector<16x128xf32>
    %7 = arith.addf %3, %6 : vector<16x128xf32>
    %c0_6 = arith.constant 0 : index
    %c0_7 = arith.constant 0 : index
    %8 = vector.load %arg7[%c0_6, %c0_7] : memref<16x128xf32, #tpu.memory_space<vmem>>, vector<16x128xf32>
    tpu.vector_store %arg7[%c0_6, %c0_7], %7 {strides = array<i32>} : memref<16x128xf32, #tpu.memory_space<vmem>>, vector<16x128xf32>,
    %c0_i32_8 = arith.constant 0 : i32
    %9 = arith.cmpi eq, %arg2, %c0_i32_8 : i32
    %10 = arith.extui %9 : i1 to i32
    %c0_i32_9 = arith.constant 0 : i32
    %11 = arith.cmpi ne, %10, %c0_i32_9 : i32
    scf.if %11 {
      %c0_10 = arith.constant 0 : index
      %c0_11 = arith.constant 0 : index
      %12 = vector.load %arg7[%c0_10, %c0_11] : memref<16x128xf32, #tpu.memory_space<vmem>>, vector<16x128xf32>
      %c0_12 = arith.constant 0 : index
      %c0_13 = arith.constant 0 : index
      %13 = vector.load %arg5[%c0_12, %c0_13] : memref<1x128xf32, #tpu.memory_space<vmem>>, vector<1x128xf32>
      %14 = vector.broadcast %13 : vector<1x128xf32> to vector<16x128xf32>
      %15 = arith.addf %12, %14 : vector<16x128xf32>
      %cst_14 = arith.constant 5.000000e-01 : f32
      %16 = vector.broadcast %cst_14 : f32 to vector<16x128xf32>
      %17 = arith.mulf %16, %15 : vector<16x128xf32>
      %cst_15 = arith.constant 0.707106769 : f32
      %18 = vector.broadcast %cst_15 : f32 to vector<16x128xf32>
      %19 = arith.mulf %15, %18 : vector<16x128xf32>
      %20 = math.erf %19 : vector<16x128xf32>
      %cst_16 = arith.constant 1.000000e+00 : f32
      %21 = vector.broadcast %cst_16 : f32 to vector<16x128xf32>
      %22 = arith.addf %21, %20 : vector<16x128xf32>
      %23 = arith.mulf %17, %22 : vector<16x128xf32>
      %c0_17 = arith.constant 0 : index
      %c0_18 = arith.constant 0 : index
      %24 = vector.load %arg6[%c0_17, %c0_18] : memref<16x128xf32, #tpu.memory_space<vmem>>, vector<16x128xf32>
      tpu.vector_store %arg6[%c0_17, %c0_18], %23 {strides = array<i32>} : memref<16x128xf32, #tpu.memory_space<vmem>>, vector<16x128xf32>,
    } else {
    }
    return
  }
  func.func @transform_0(%arg0: i32, %arg1: i32, %arg2: i32) -> (i32, i32) {
    %c0_i32 = arith.constant 0 : i32
    return %arg1, %arg2 : i32, i32
  }
  func.func @transform_1(%arg0: i32, %arg1: i32, %arg2: i32) -> (i32, i32) {
    %c0_i32 = arith.constant 0 : i32
    return %arg2, %arg0 : i32, i32
  }
  func.func @transform_2(%arg0: i32, %arg1: i32, %arg2: i32) -> (i32, i32) {
    %c0_i32 = arith.constant 0 : i32
    %c0_i32_0 = arith.constant 0 : i32
    return %c0_i32, %arg0 : i32, i32
  }
  func.func @transform_3(%arg0: i32, %arg1: i32, %arg2: i32) -> (i32, i32) {
    %c0_i32 = arith.constant 0 : i32
    return %arg1, %arg0 : i32, i32
  }
}

</mosaic_0001>

<llo_original>
// kernel: tpu_custom_call.1
$region0: #{tpu_custom_call.1}
  #allocation0 [shape = 'u32[]', space=smem, size = 0x4, offset = 0x4, fixed_abs, tag = 'smem constant byte address 0x4 - core index']
  #allocation1 [shape = 'u32[72,128]{1,0:T(1,128)}', space=vmem, size = 0x9000, scoped, tag = 'internal scratch']
  #allocation2 [shape = 'f32[16,128]{1,0:T(8,128)}', space=vmem, size = 0x2000, scoped, tag = 'scratch operand']
  %s0 = inlined_call_operand.hbm [shape: f32[16,128], index: 0, kind: input, shape index: {}]
  %s1 = inlined_call_operand.hbm [shape: f32[128,128], index: 1, kind: input, shape index: {}]
  %s2 = inlined_call_operand.vmem [shape: f32[1,128], index: 2, kind: input, shape index: {}]
  %s3 = inlined_call_operand.hbm [shape: f32[16,128], index: 3, kind: output, shape index: {}]
  %s4 = sld [smem:[#allocation0]]
  $region38: #{tpu_custom_call.1} parent=0
    _
  %s6 = ssub.s32 1, %s4
  %s7 = scalar_select 0, %s6, %s4
  $region1: #{tpu_custom_call.1} parent=0
    #allocation3 [shape = 'u8[8192]{0}', space=vmem, size = 0x2000, scoped, tag = 'input window, operand 0, single buffered']
    #allocation4 [shape = 's32[1]{0}', space=sflag, size = 0x4, scoped, tag = 'scoped memory for tpu_custom_call.1']
    #allocation5 [shape = 's32[1]{0}', space=sflag, size = 0x4, scoped, tag = 'scoped memory for tpu_custom_call.1']
    #allocation6 [shape = 'u8[65536]{0}', space=vmem, size = 0x10000, scoped, tag = 'input window, operand 1, single buffered']
    #allocation7 [shape = 's32[1]{0}', space=sflag, size = 0x4, scoped, tag = 'scoped memory for tpu_custom_call.1']
    #allocation8 [shape = 'u8[8192]{0}', space=vmem, size = 0x2000, scoped, tag = 'output window, operand 0, single buffered']
    %8 = vsyncpa [#allocation4], 0
    %9 = vsyncpa [#allocation7], 0
    %10 = vsyncpa [#allocation5], 0
    // Predicated region
    $region2: #{tpu_custom_call.1} parent=1 // pred_check
      _
    $region3: #{tpu_custom_call.1} parent=1 // pred_check_branch
      %12 = sbr.rel (0) target = $region5
    $region4: #{tpu_custom_call.1} parent=1 // pred_region
      %14 = vsyncadd [#allocation4], 0
      %s15 = sshll.u32 %s0, 4
      %s16 = int_to_ptr.hbm [resolvable:$true] %s15
      %s17 = sshll.u32 [#allocation3], 4
      %s18 = int_to_ptr.vmem [resolvable:$true] %s17
      %23 = dma.hbm_to_vmem [thread:$0]  %s16, 256, %s18, [#allocation4], 128, 128, 8
    $region5: #{tpu_custom_call.1} parent=1 // pred_fallthru
      _
    // Predicated region
    $region6: #{tpu_custom_call.1} parent=1 // pred_check
      _
    $region7: #{tpu_custom_call.1} parent=1 // pred_check_branch
      %25 = sbr.rel (0) target = $region9
    $region8: #{tpu_custom_call.1} parent=1 // pred_region
      %27 = vsyncadd [#allocation7], 0
      %s28 = sshll.u32 %s1, 4
      %s29 = int_to_ptr.hbm [resolvable:$true] %s28
      %s30 = sshll.u32 [#allocation6], 4
      %s31 = int_to_ptr.vmem [resolvable:$true] %s30
      %36 = dma.hbm_to_vmem [thread:$0]  %s29, 2048, %s31, [#allocation7], 128, 128, 8
    $region9: #{tpu_custom_call.1} parent=1 // pred_fallthru
      _
    // Predicated region
    $region10: #{tpu_custom_call.1} parent=1 // pred_check
      _
    $region11: #{tpu_custom_call.1} parent=1 // pred_check_branch
      %38 = sbr.rel (0) target = $region13
    $region12: #{tpu_custom_call.1} parent=1 // pred_region
      _
    $region13: #{tpu_custom_call.1} parent=1 // pred_fallthru
      _
    // Predicated region
    $region14: #{tpu_custom_call.1} parent=1 // pred_check
      _
    $region15: #{tpu_custom_call.1} parent=1 // pred_check_branch
      %40 = sbr.rel (0) target = $region17
    $region16: #{tpu_custom_call.1} parent=1 // pred_region
      %42 = dma.done [#allocation4], 256
    $region17: #{tpu_custom_call.1} parent=1 // pred_fallthru
      _
    // Predicated region
    $region18: #{tpu_custom_call.1} parent=1 // pred_check
      _
    $region19: #{tpu_custom_call.1} parent=1 // pred_check_branch
      %44 = sbr.rel (0) target = $region21
    $region20: #{tpu_custom_call.1} parent=1 // pred_region
      %46 = dma.done [#allocation7], 2048
    $region21: #{tpu_custom_call.1} parent=1 // pred_fallthru
      _
    %p47 = scmp.eq.s32.totalorder 0, 0
    // Predicated region
    $region22: #{tpu_custom_call.1} parent=1 // pred_check
      %p48 = pneg %p47
    $region23: #{tpu_custom_call.1} parent=1 // pred_check_branch
      %50 = sbr.rel (%p48) target = $region25
    $region24: #{tpu_custom_call.1} parent=1 // pred_region
      %51 = vst [vmem:[#allocation2] sm:$0xff] 0.0
      %52 = vst [vmem:[#allocation2 + $0x8] sm:$0xff] 0.0
    $region25: #{tpu_custom_call.1} parent=1 // pred_fallthru
      _
    %v53 = vld [vmem:[#allocation2] sm:$0xff]
    %v54 = vld [vmem:[#allocation2 + $0x8] sm:$0xff]
    %v55 = vld [vmem:[#allocation3] sm:$0xff]
    %v56 = vld [vmem:[#allocation3 + $0x8] sm:$0xff]
    %v57 = vld [vmem:[#allocation6] sm:$0xff]
    %v58 = vld [vmem:[#allocation6 + $0x8] sm:$0xff]
    %v59 = vld [vmem:[#allocation6 + $0x10] sm:$0xff]
    %v60 = vld [vmem:[#allocation6 + $0x18] sm:$0xff]
    %v61 = vld [vmem:[#allocation6 + $0x20] sm:$0xff]
    %v62 = vld [vmem:[#allocation6 + $0x28] sm:$0xff]
    %v63 = vld [vmem:[#allocation6 + $0x30] sm:$0xff]
    %v64 = vld [vmem:[#allocation6 + $0x38] sm:$0xff]
    %v65 = vld [vmem:[#allocation6 + $0x40] sm:$0xff]
    %v66 = vld [vmem:[#allocation6 + $0x48] sm:$0xff]
    %v67 = vld [vmem:[#allocation6 + $0x50] sm:$0xff]
    %v68 = vld [vmem:[#allocation6 + $0x58] sm:$0xff]
    %v69 = vld [vmem:[#allocation6 + $0x60] sm:$0xff]
    %v70 = vld [vmem:[#allocation6 + $0x68] sm:$0xff]
    %v71 = vld [vmem:[#allocation6 + $0x70] sm:$0xff]
    %v72 = vld [vmem:[#allocation6 + $0x78] sm:$0xff]
    %73 = vmatpush.msra.mxu0 %v72
    %74 = vmatpush.msra.mxu0 %v71
    %75 = vmatpush.msra.mxu0 %v70
    %76 = vmatpush.msra.mxu0 %v69
    %77 = vmatpush.msra.mxu0 %v68
    %78 = vmatpush.msra.mxu0 %v67
    %79 = vmatpush.msra.mxu0 %v66
    %80 = vmatpush.msra.mxu0 %v65
    %81 = vmatpush.msra.mxu0 %v64
    %82 = vmatpush.msra.mxu0 %v63
    %83 = vmatpush.msra.mxu0 %v62
    %84 = vmatpush.msra.mxu0 %v61
    %85 = vmatpush.msra.mxu0 %v60
    %86 = vmatpush.msra.mxu0 %v59
    %87 = vmatpush.msra.mxu0 %v58
    %88 = vmatpush.msra.mxu0 %v57
    %89 = vmatmul.f32.gmra.mxu0 %v55
    %v90 = vpop.f32.mrf.mxu0
    %v91 = vadd.f32 0.0, %v90
    %92 = vmatmul.f32.gmra.mxu0 %v56
    %v93 = vpop.f32.mrf.mxu0
    %v94 = vadd.f32 0.0, %v93
    %95 = vdwg.mxu0
    %v96 = vadd.f32 %v53, %v91
    %v97 = vadd.f32 %v54, %v94
    %98 = vst [vmem:[#allocation2] sm:$0xff] %v96
    %99 = vst [vmem:[#allocation2 + $0x8] sm:$0xff] %v97
    // Predicated region
    $region26: #{tpu_custom_call.1} parent=1 // pred_check
      %p100 = pneg %p47
    $region27: #{tpu_custom_call.1} parent=1 // pred_check_branch
      %102 = sbr.rel (%p100) target = $region29
    $region28: #{tpu_custom_call.1} parent=1 // pred_region
      %v103 = vld [vmem:[#allocation2] sm:$0xff]
      %v104 = vld [vmem:[#allocation2 + $0x8] sm:$0xff]
      %v105 = vld [vmem:[%s2] sm:$0x1]
      %v107 = vperm.slane %v105, 0
      %v109 = vadd.f32 %v103, %v107
      %v110 = vadd.f32 %v104, %v107
      %v111 = vmul.f32 %v109, 0.5
      %v112 = vmul.f32 %v110, 0.5
      %v113 = vmul.f32 %v109, 0.70710677
      %v114 = vmul.f32 %v110, 0.70710677
      %v115 = vmul.f32 %v113, %v113
      %v116 = vmin.f32 16.0, %v115
      %v117 = vmul.f32 %v116, 2.1237322e-06
      %v118 = vadd.f32 %v117, 0.00028619796
      %v119 = vmul.f32 %v116, %v118
      %v120 = vadd.f32 %v119, 0.0036580483
      %v121 = vmul.f32 %v116, %v120
      %v122 = vadd.f32 %v121, 0.05243302
      %v123 = vmul.f32 %v116, %v122
      %v124 = vadd.f32 %v123, 0.18741608
      %v125 = vmul.f32 %v116, %v124
      %v126 = vadd.f32 %v125, 1.1283791
      %v127 = vmul.f32 %v113, %v126
      %v128 = vmul.f32 %v116, 3.8918573e-05
      %v129 = vadd.f32 %v128, 0.001143296
      %v130 = vmul.f32 %v116, %v129
      %v131 = vadd.f32 %v130, 0.014752088
      %v132 = vmul.f32 %v116, %v131
      %v133 = vadd.f32 %v132, 0.112945676
      %v134 = vmul.f32 %v116, %v133
      %v135 = vadd.f32 %v134, 0.4994258
      %v136 = vmul.f32 %v116, %v135
      %v137 = vadd.f32 %v136, 1.0
      %v138 = vrcp.pop %v137
      %v139 = vmul.f32 %v137, %v138
      %v140 = vsub.f32 1.0, %v139
      %v141 = vmul.f32 %v138, %v140
      %v142 = vadd.f32 %v138, %v141
      %vm143 = vweird.f32 %v137
      %vm144 = vweird.f32 %v138
      %vm145 = vmor %vm143, %vm144
      %v146 = vsel %vm145, %v138, %v142
      %v147 = vand.u32 2147483647, %v137
      %vm148 = vcmp.eq.f32.partialorder %v147, 8.507059e+37
      %v149 = vand.u32 %v137, 2147483648
      %v150 = vor.u32 1.1754944e-38, %v149
      %v151 = vsel %vm148, %v150, %v146
      %v152 = vmul.f32 %v127, %v151
      %v153 = vmin.f32 %v152, 1.0
      %v154 = vmax.f32 %v153, -1.0
      %v155 = vmul.f32 %v114, %v114
      %v156 = vmin.f32 16.0, %v155
      %v157 = vmul.f32 %v156, 2.1237322e-06
      %v158 = vadd.f32 %v157, 0.00028619796
      %v159 = vmul.f32 %v156, %v158
      %v160 = vadd.f32 %v159, 0.0036580483
      %v161 = vmul.f32 %v156, %v160
      %v162 = vadd.f32 %v161, 0.05243302
      %v163 = vmul.f32 %v156, %v162
      %v164 = vadd.f32 %v163, 0.18741608
      %v165 = vmul.f32 %v156, %v164
      %v166 = vadd.f32 %v165, 1.1283791
      %v167 = vmul.f32 %v114, %v166
      %v168 = vmul.f32 %v156, 3.8918573e-05
      %v169 = vadd.f32 %v168, 0.001143296
      %v170 = vmul.f32 %v156, %v169
      %v171 = vadd.f32 %v170, 0.014752088
      %v172 = vmul.f32 %v156, %v171
      %v173 = vadd.f32 %v172, 0.112945676
      %v174 = vmul.f32 %v156, %v173
      %v175 = vadd.f32 %v174, 0.4994258
      %v176 = vmul.f32 %v156, %v175
      %v177 = vadd.f32 %v176, 1.0
      %v178 = vrcp.pop %v177
      %v179 = vmul.f32 %v177, %v178
      %v180 = vsub.f32 1.0, %v179
      %v181 = vmul.f32 %v178, %v180
      %v182 = vadd.f32 %v178, %v181
      %vm183 = vweird.f32 %v177
      %vm184 = vweird.f32 %v178
      %vm185 = vmor %vm183, %vm184
      %v186 = vsel %vm185, %v178, %v182
      %v187 = vand.u32 2147483647, %v177
      %vm188 = vcmp.eq.f32.partialorder %v187, 8.507059e+37
      %v189 = vand.u32 %v177, 2147483648
      %v190 = vor.u32 1.1754944e-38, %v189
      %v191 = vsel %vm188, %v190, %v186
      %v192 = vmul.f32 %v167, %v191
      %v193 = vmin.f32 %v192, 1.0
      %v194 = vmax.f32 %v193, -1.0
      %v195 = vadd.f32 %v154, 1.0
      %v196 = vadd.f32 %v194, 1.0
      %v197 = vmul.f32 %v111, %v195
      %v198 = vmul.f32 %v112, %v196
      %199 = vst [vmem:[#allocation8] sm:$0xff] %v197
      %200 = vst [vmem:[#allocation8 + $0x8] sm:$0xff] %v198
    $region29: #{tpu_custom_call.1} parent=1 // pred_fallthru
      _
    // Predicated region
    $region30: #{tpu_custom_call.1} parent=1 // pred_check
      _
    $region31: #{tpu_custom_call.1} parent=1 // pred_check_branch
      %202 = sbr.rel (0) target = $region33
    $region32: #{tpu_custom_call.1} parent=1 // pred_region
      %204 = vsyncadd [#allocation5], 0
      %s205 = sshll.u32 [#allocation8], 4
      %s206 = int_to_ptr.vmem [resolvable:$true] %s205
      %s207 = sshll.u32 %s3, 4
      %s208 = int_to_ptr.hbm [resolvable:$true] %s207
      %213 = dma.vmem_to_hbm [thread:$0]  %s206, 256, %s208, [#allocation5], 128, 128, 8
    $region33: #{tpu_custom_call.1} parent=1 // pred_fallthru
      _
    // Predicated region
    $region34: #{tpu_custom_call.1} parent=1 // pred_check
      _
    $region35: #{tpu_custom_call.1} parent=1 // pred_check_branch
      %215 = sbr.rel (0) target = $region37
    $region36: #{tpu_custom_call.1} parent=1 // pred_region
      %217 = dma.done [#allocation5], 256
    $region37: #{tpu_custom_call.1} parent=1 // pred_fallthru
      _
    %218 = vsyncpa [#allocation4], 1
    %219 = vsyncpa [#allocation7], 1
    %220 = vsyncpa [#allocation5], 1

</llo_original>
